<compile_context>
chip_gen: v5e
topology: v5e:2x2
jax: 0.10.0
libtpu: 0.0.40
codegen_flags: <defaults>
</compile_context>

<pallas_src>
import math

import jax
import jax.numpy as jnp
from jax.experimental import pallas as pl
from jax.experimental.pallas import tpu as pltpu

EPS = 1e-6  # torch.nn.PairwiseDistance default eps (added to the difference)


# ---------------------------------------------------------------------------
# Kernels
# ---------------------------------------------------------------------------
def _epilogue(feats, fcw_ref, fcb_ref, out_ref, dist_ref, B_pad):
    """feats: (3*B_pad, D) f32 = (doc_i - selfie_i) @ W, blocks of B_pad rows."""
    # Tiny scalar reads first.
    w0 = fcw_ref[0]
    w1 = fcw_ref[1]
    w2 = fcw_ref[2]
    bf = fcb_ref[0]

    def dist_block(i):
        # ||feat_doc - feat_selfie + eps||_2 (basemodel bias cancels exactly).
        d = feats[i * B_pad:(i + 1) * B_pad] + EPS      # aligned static slice
        return jnp.sqrt(jnp.sum(d * d, axis=-1, keepdims=True))   # (B_pad, 1)

    d1 = dist_block(0)
    d2 = dist_block(1)
    d3 = dist_block(2)

    dist_ref[:, 0:1] = d1
    dist_ref[:, 1:2] = d2
    dist_ref[:, 2:3] = d3
    out_ref[...] = d1 * w0 + d2 * w1 + d3 * w2 + bf


def _make_accum_kernel(B_pad):
    """Multi-step K-reduction kernel with an f32 VMEM accumulator."""

    def kernel(x_ref, w_ref, fcw_ref, fcb_ref, out_ref, dist_ref, acc_ref):
        k = pl.program_id(0)

        @pl.when(k == 0)
        def _init():
            acc_ref[...] = jnp.zeros_like(acc_ref)

        # bf16 x bf16 -> f32 accumulate on the MXU; one matmul for all 3 diffs.
        acc_ref[...] += jnp.dot(x_ref[...], w_ref[...],
                                preferred_element_type=jnp.float32)

        @pl.when(k == pl.num_programs(0) - 1)
        def _fin():
            _epilogue(acc_ref[...], fcw_ref, fcb_ref, out_ref, dist_ref, B_pad)

    return kernel


def _make_single_kernel(B_pad):
    """Single-step fast path: whole K resident, no accumulator scratch."""

    def kernel(x_ref, w_ref, fcw_ref, fcb_ref, out_ref, dist_ref):
        feats = jnp.dot(x_ref[...], w_ref[...],
                        preferred_element_type=jnp.float32)
        _epilogue(feats, fcw_ref, fcb_ref, out_ref, dist_ref, B_pad)

    return kernel


# ---------------------------------------------------------------------------
# Planning / one-time weight preparation
# ---------------------------------------------------------------------------
def _vmem_capacity_bytes():
    try:
        info = pltpu.get_tpu_info()
        cap = getattr(info, "vmem_capacity_bytes", None)
        if cap:
            return int(cap)
    except Exception:
        pass
    return 64 * 1024 * 1024  # conservative default (v7x per-TC VMEM)


def make_plan(B, K, D):
    """Pick padding and a VMEM-budget-driven contraction tile."""
    B_pad = max(16, ((B + 15) // 16) * 16)     # bf16/f32 sublane-tile aligned blocks
    M_pad = 3 * B_pad                          # 3 stacked doc-selfie diffs

    phys = _vmem_capacity_bytes()
    # ~40 MiB on v7x (64 MiB physical), 64 MiB on v5e/v6e (128 MiB physical).
    vmem_limit = min(phys * 5 // 8, 64 * 1024 * 1024)

    acc_bytes = M_pad * D * 4                  # f32 accumulator (multi-step path)
    budget = int(vmem_limit * 0.75) - acc_bytes
    # Double-buffered bf16 X and W blocks: 2 * tk * (M_pad + D) * 2 bytes.
    tk_max = budget // (4 * (M_pad + D))
    tk_max = max(512, (tk_max // 128) * 128)   # lane-aligned, never tiny
    tk_max = min(tk_max, 8192)                 # diminishing returns past ~8k

    Kp_min = max(128, ((K + 127) // 128) * 128)
    if Kp_min <= tk_max:
        tk, kt = Kp_min, 1                     # single-step fast path
    else:
        tk = tk_max
        kt = (K + tk - 1) // tk
    Kp = kt * tk

    return dict(B=B, K=K, D=D, B_pad=B_pad, M_pad=M_pad,
                tk=tk, kt=kt, Kp=Kp, vmem_limit=vmem_limit)


def prepare_basemodel_weight(w_base, plan):
    """One-time prep: cast the shared basemodel weight to bf16 and pad K."""
    K, _ = w_base.shape
    Kp = plan["Kp"]
    w = w_base.astype(jnp.bfloat16)
    if Kp > K:
        w = jnp.pad(w, ((0, Kp - K), (0, 0)))
    return w


# ---------------------------------------------------------------------------
# Forward
# ---------------------------------------------------------------------------
def multiscale_net_svm(doc_x1, doc_x2, doc_x3,
                       selfie_x1, selfie_x2, selfie_x3,
                       w_prep, fc_w, fc_b, plan):
    """Forward pass matching clsMultiScaleNetSVM. Returns (output, dict_dist)."""
    B, K = plan["B"], plan["K"]
    B_pad, M_pad = plan["B_pad"], plan["M_pad"]
    Kp, tk, kt = plan["Kp"], plan["tk"], plan["kt"]
    D = w_prep.shape[1]

    # Pre-subtract doc - selfie in f32, THEN quantize the difference to bf16.
    # subtract -> cast -> pad -> concat fuses into one wrapper HBM pass.
    def diff_rows(doc, selfie):
        d = (doc.astype(jnp.float32) - selfie.astype(jnp.float32)).reshape(B, K)
        d = d.astype(jnp.bfloat16)
        return jnp.pad(d, ((0, B_pad - B), (0, Kp - K)))

    X = jnp.concatenate([diff_rows(doc_x1, selfie_x1),
                         diff_rows(doc_x2, selfie_x2),
                         diff_rows(doc_x3, selfie_x3)], axis=0)   # (M_pad, Kp) bf16

    fcw = fc_w.reshape(3).astype(jnp.float32)
    fcb = fc_b.reshape(1).astype(jnp.float32)

    in_specs = [
        pl.BlockSpec((M_pad, tk), lambda k: (0, k)),              # stacked diffs
        pl.BlockSpec((tk, D), lambda k: (k, 0)),                  # shared basemodel W
        pl.BlockSpec(memory_space=pltpu.MemorySpace.SMEM),        # fc weight (3,)
        pl.BlockSpec(memory_space=pltpu.MemorySpace.SMEM),        # fc bias (1,)
    ]
    out_specs = (
        pl.BlockSpec((B_pad, 1), lambda k: (0, 0)),               # fc output
        pl.BlockSpec((B_pad, 3), lambda k: (0, 0)),               # distances
    )

    if kt > 1:
        kernel = _make_accum_kernel(B_pad)
        scratch = [pltpu.VMEM((M_pad, D), jnp.float32)]           # f32 accumulator
    else:
        kernel = _make_single_kernel(B_pad)
        scratch = []

    grid_spec = pltpu.PrefetchScalarGridSpec(
        num_scalar_prefetch=0,
        grid=(kt,),
        in_specs=in_specs,
        out_specs=out_specs,
        scratch_shapes=scratch,
    )

    flops = 2 * M_pad * Kp * D
    bytes_accessed = X.size * 2 + w_prep.size * 2 + B_pad * 4 * 4 + 16

    out_pad, dist_pad = pl.pallas_call(
        kernel,
        out_shape=(jax.ShapeDtypeStruct((B_pad, 1), jnp.float32),
                   jax.ShapeDtypeStruct((B_pad, 3), jnp.float32)),
        grid_spec=grid_spec,
        compiler_params=pltpu.CompilerParams(
            dimension_semantics=("arbitrary",),        # K is a reduction axis
            vmem_limit_bytes=plan["vmem_limit"]),
        cost_estimate=pl.CostEstimate(flops=flops, transcendentals=0,
                                      bytes_accessed=bytes_accessed),
    )(X, w_prep, fcw, fcb)

    output = out_pad[:B]
    dist = dist_pad[:B]
    dict_dist = {'dist_x1': dist[:, 0:1],
                 'dist_x2': dist[:, 1:2],
                 'dist_x3': dist[:, 2:3]}
    return output, dict_dist


# ---------------------------------------------------------------------------
# Pure-JAX f32 reference (faithful to the PyTorch forward, bias included)
# ---------------------------------------------------------------------------
def _reference(imgs, w, b, fc_w, fc_b):
    B = imgs[0].shape[0]
    flat = lambda x: x.reshape(B, -1).astype(jnp.float32)
    feats = [flat(x) @ w + b for x in imgs]
    pd = lambda a, bb: jnp.sqrt(jnp.sum((a - bb + EPS) ** 2, axis=-1,
                                        keepdims=True))
    d1 = pd(feats[0], feats[3])
    d2 = pd(feats[1], feats[4])
    d3 = pd(feats[2], feats[5])
    dist = jnp.concatenate([d1, d2, d3], axis=1)
    out = dist @ fc_w.reshape(3, 1) + fc_b.reshape(1, 1)
    return out, dist


if __name__ == "__main__":
    # Small shapes implied by the forward: NCHW images, embedding dim D.
    # D is a free parameter of the synthetic extractor -> pick it lane-dense.
    B, C, H, W = 2, 4, 16, 16
    K = C * H * W
    D = 128

    key = jax.random.PRNGKey(0)
    keys = jax.random.split(key, 10)

    imgs = [jax.random.normal(keys[i], (B, C, H, W), dtype=jnp.float32)
            for i in range(6)]
    doc_x1, doc_x2, doc_x3, selfie_x1, selfie_x2, selfie_x3 = imgs

    # Deterministic synthetic shared basemodel (linear feature extractor).
    w_base = jax.random.normal(keys[6], (K, D), dtype=jnp.float32) * 0.02
    b_base = jax.random.normal(keys[7], (D,), dtype=jnp.float32) * 0.02

    # fc: Linear(3 -> 1)
    fc_w = jax.random.normal(keys[8], (3,), dtype=jnp.float32) * 0.5
    fc_b = jax.random.normal(keys[9], (1,), dtype=jnp.float32) * 0.5

    plan = make_plan(B, K, D)
    # One-time weight prep (hoisted out of the per-call path).
    w_prep = jax.block_until_ready(prepare_basemodel_weight(w_base, plan))

    out, dict_dist = multiscale_net_svm(
        doc_x1, doc_x2, doc_x3, selfie_x1, selfie_x2, selfie_x3,
        w_prep, fc_w, fc_b, plan)
    out = jax.block_until_ready(out)

    ref_out, ref_dist = _reference(imgs, w_base, b_base, fc_w, fc_b)
    dist = jnp.concatenate([dict_dist['dist_x1'],
                            dict_dist['dist_x2'],
                            dict_dist['dist_x3']], axis=1)

    assert out.shape == (B, 1), out.shape
    assert dist.shape == (B, 3), dist.shape
    # bf16 matmul (of the f32-pre-subtracted diffs) vs. pure-f32 reference.
    assert jnp.allclose(dist, ref_dist, atol=5e-2, rtol=5e-2), (dist, ref_dist)
    assert jnp.allclose(out, ref_out, atol=5e-2, rtol=5e-2), (out, ref_out)

    print("KERNEL_OK")
</pallas_src>

<mosaic_0001>
module attributes {stable_mosaic.version = 11 : i64} {
  func.func @kernel(%arg0: i32, %arg1: memref<48x1024xbf16, #tpu.memory_space<vmem>>, %arg2: memref<1024x128xbf16, #tpu.memory_space<vmem>>, %arg3: memref<3xf32, #tpu.memory_space<smem>>, %arg4: memref<1xf32, #tpu.memory_space<smem>>, %arg5: memref<16x1xf32, #tpu.memory_space<vmem>>, %arg6: memref<16x3xf32, #tpu.memory_space<vmem>>) attributes {dimension_semantics = [#tpu.dimension_semantics<arbitrary>], iteration_bounds = array<i64: 1>, scalar_prefetch = 0 : i64, scratch_operands = 0 : i64, tpu.core_type = #tpu.core_type<tc>, window_params = [{transform_indices = @transform_0, window_bounds = array<i64: 48, 1024>}, {transform_indices = @transform_1, window_bounds = array<i64: 1024, 128>}, {transform_indices = @transform_2, window_bounds = array<i64: 3>}, {transform_indices = @transform_3, window_bounds = array<i64: 1>}, {pipeline_mode = #tpu.pipeline_mode<synchronous>, transform_indices = @transform_4, window_bounds = array<i64: 16, 1>}, {pipeline_mode = #tpu.pipeline_mode<synchronous>, transform_indices = @transform_5, window_bounds = array<i64: 16, 3>}]} {
    %c0 = arith.constant 0 : index
    %c0_0 = arith.constant 0 : index
    %0 = vector.load %arg1[%c0, %c0_0] : memref<48x1024xbf16, #tpu.memory_space<vmem>>, vector<48x1024xbf16>
    %c0_1 = arith.constant 0 : index
    %c0_2 = arith.constant 0 : index
    %1 = vector.load %arg2[%c0_1, %c0_2] : memref<1024x128xbf16, #tpu.memory_space<vmem>>, vector<1024x128xbf16>
    %cst = arith.constant dense<0.000000e+00> : vector<48x128xf32>
    %2 = tpu.matmul %0, %1, %cst {dimension_numbers = #tpu.dot_dimension_numbers<[1], [0], [0], [1], [0, 0, 1, 1], [], []>} : vector<48x1024xbf16>, vector<1024x128xbf16>, vector<48x128xf32> -> vector<48x128xf32>
    %c0_3 = arith.constant 0 : index
    %3 = memref.load %arg3[%c0_3] : memref<3xf32, #tpu.memory_space<smem>>
    %c1 = arith.constant 1 : index
    %4 = memref.load %arg3[%c1] : memref<3xf32, #tpu.memory_space<smem>>
    %c2 = arith.constant 2 : index
    %5 = memref.load %arg3[%c2] : memref<3xf32, #tpu.memory_space<smem>>
    %c0_4 = arith.constant 0 : index
    %6 = memref.load %arg4[%c0_4] : memref<1xf32, #tpu.memory_space<smem>>
    %7 = vector.extract_strided_slice %2 {offsets = [0, 0], sizes = [16, 128], strides = [1, 1]} : vector<48x128xf32> to vector<16x128xf32>
    %cst_5 = arith.constant 9.99999997E-7 : f32
    %8 = vector.broadcast %cst_5 : f32 to vector<16x128xf32>
    %9 = arith.addf %7, %8 : vector<16x128xf32>
    %10 = arith.mulf %9, %9 : vector<16x128xf32>
    %cst_6 = arith.constant dense<0.000000e+00> : vector<16xf32>
    %11 = vector.multi_reduction <add>, %10, %cst_6 [1] : vector<16x128xf32> to vector<16xf32>
    %12 = vector.shape_cast %11 : vector<16xf32> to vector<16x1xf32>
    %13 = math.sqrt %12 : vector<16x1xf32>
    %14 = vector.extract_strided_slice %2 {offsets = [16, 0], sizes = [16, 128], strides = [1, 1]} : vector<48x128xf32> to vector<16x128xf32>
    %cst_7 = arith.constant 9.99999997E-7 : f32
    %15 = vector.broadcast %cst_7 : f32 to vector<16x128xf32>
    %16 = arith.addf %14, %15 : vector<16x128xf32>
    %17 = arith.mulf %16, %16 : vector<16x128xf32>
    %cst_8 = arith.constant dense<0.000000e+00> : vector<16xf32>
    %18 = vector.multi_reduction <add>, %17, %cst_8 [1] : vector<16x128xf32> to vector<16xf32>
    %19 = vector.shape_cast %18 : vector<16xf32> to vector<16x1xf32>
    %20 = math.sqrt %19 : vector<16x1xf32>
    %21 = vector.extract_strided_slice %2 {offsets = [32, 0], sizes = [16, 128], strides = [1, 1]} : vector<48x128xf32> to vector<16x128xf32>
    %cst_9 = arith.constant 9.99999997E-7 : f32
    %22 = vector.broadcast %cst_9 : f32 to vector<16x128xf32>
    %23 = arith.addf %21, %22 : vector<16x128xf32>
    %24 = arith.mulf %23, %23 : vector<16x128xf32>
    %cst_10 = arith.constant dense<0.000000e+00> : vector<16xf32>
    %25 = vector.multi_reduction <add>, %24, %cst_10 [1] : vector<16x128xf32> to vector<16xf32>
    %26 = vector.shape_cast %25 : vector<16xf32> to vector<16x1xf32>
    %27 = math.sqrt %26 : vector<16x1xf32>
    %c0_11 = arith.constant 0 : index
    %c0_12 = arith.constant 0 : index
    %28 = vector.load %arg6[%c0_11, %c0_12] : memref<16x3xf32, #tpu.memory_space<vmem>>, vector<16x1xf32>
    tpu.vector_store %arg6[%c0_11, %c0_12], %13 {strides = array<i32>} : memref<16x3xf32, #tpu.memory_space<vmem>>, vector<16x1xf32>,
    %c0_13 = arith.constant 0 : index
    %c1_14 = arith.constant 1 : index
    %29 = vector.load %arg6[%c0_13, %c1_14] : memref<16x3xf32, #tpu.memory_space<vmem>>, vector<16x1xf32>
    tpu.vector_store %arg6[%c0_13, %c1_14], %20 {strides = array<i32>} : memref<16x3xf32, #tpu.memory_space<vmem>>, vector<16x1xf32>,
    %c0_15 = arith.constant 0 : index
    %c2_16 = arith.constant 2 : index
    %30 = vector.load %arg6[%c0_15, %c2_16] : memref<16x3xf32, #tpu.memory_space<vmem>>, vector<16x1xf32>
    tpu.vector_store %arg6[%c0_15, %c2_16], %27 {strides = array<i32>} : memref<16x3xf32, #tpu.memory_space<vmem>>, vector<16x1xf32>,
    %31 = vector.broadcast %3 : f32 to vector<16x1xf32>
    %32 = arith.mulf %13, %31 : vector<16x1xf32>
    %33 = vector.broadcast %4 : f32 to vector<16x1xf32>
    %34 = arith.mulf %20, %33 : vector<16x1xf32>
    %35 = arith.addf %32, %34 : vector<16x1xf32>
    %36 = vector.broadcast %5 : f32 to vector<16x1xf32>
    %37 = arith.mulf %27, %36 : vector<16x1xf32>
    %38 = arith.addf %35, %37 : vector<16x1xf32>
    %39 = vector.broadcast %6 : f32 to vector<16x1xf32>
    %40 = arith.addf %38, %39 : vector<16x1xf32>
    %c0_17 = arith.constant 0 : index
    %c0_18 = arith.constant 0 : index
    %41 = vector.load %arg5[%c0_17, %c0_18] : memref<16x1xf32, #tpu.memory_space<vmem>>, vector<16x1xf32>
    tpu.vector_store %arg5[%c0_17, %c0_18], %40 {strides = array<i32>} : memref<16x1xf32, #tpu.memory_space<vmem>>, vector<16x1xf32>,
    return
  }
  func.func @transform_0(%arg0: i32) -> (i32, i32) {
    %c0_i32 = arith.constant 0 : i32
    %c0_i32_0 = arith.constant 0 : i32
    return %c0_i32, %arg0 : i32, i32
  }
  func.func @transform_1(%arg0: i32) -> (i32, i32) {
    %c0_i32 = arith.constant 0 : i32
    %c0_i32_0 = arith.constant 0 : i32
    return %arg0, %c0_i32 : i32, i32
  }
  func.func @transform_2(%arg0: i32) -> i32 {
    %c0_i32 = arith.constant 0 : i32
    %c0_i32_0 = arith.constant 0 : i32
    return %c0_i32 : i32
  }
  func.func @transform_3(%arg0: i32) -> i32 {
    %c0_i32 = arith.constant 0 : i32
    %c0_i32_0 = arith.constant 0 : i32
    return %c0_i32 : i32
  }
  func.func @transform_4(%arg0: i32) -> (i32, i32) {
    %c0_i32 = arith.constant 0 : i32
    %c0_i32_0 = arith.constant 0 : i32
    %c0_i32_1 = arith.constant 0 : i32
    return %c0_i32, %c0_i32_0 : i32, i32
  }
  func.func @transform_5(%arg0: i32) -> (i32, i32) {
    %c0_i32 = arith.constant 0 : i32
    %c0_i32_0 = arith.constant 0 : i32
    %c0_i32_1 = arith.constant 0 : i32
    return %c0_i32, %c0_i32_0 : i32, i32
  }
}

</mosaic_0001>

<llo_original>
// kernel: tpu_custom_call.1
$region0: #{tpu_custom_call.1}
  #allocation0 [shape = 'u32[]', space=smem, size = 0x4, offset = 0x4, fixed_abs, tag = 'smem constant byte address 0x4 - core index']
  #allocation1 [shape = 'u32[72,128]{1,0:T(1,128)}', space=vmem, size = 0x9000, scoped, tag = 'internal scratch']
  #allocation2 [shape = 'f32[1]{0:T(128)S(6)}', space=smem, size = 0x200, scoped, tag = 'scoped memory for tpu_custom_call.1']
  %s0 = inlined_call_operand.hbm [shape: bf16[48,1024], index: 0, kind: input, shape index: {}]
  %s1 = inlined_call_operand.hbm [shape: bf16[1024,128], index: 1, kind: input, shape index: {}]
  %s2 = inlined_call_operand.vmem [shape: f32[3], index: 2, kind: input, shape index: {}]
  %s3 = inlined_call_operand.<no memory space> [shape: f32[1], index: 3, kind: input, shape index: {}]
  %s4 = inlined_call_operand.vmem [shape: f32[16,1], index: 4, kind: output, shape index: {0}]
  %s5 = inlined_call_operand.vmem [shape: f32[16,3], index: 5, kind: output, shape index: {1}]
  %6 = xla_tuple %s4, %s5
  %s7 = sld [smem:[#allocation0]]
  $region46: #{tpu_custom_call.1} parent=0
    _
  %s9 = ssub.s32 1, %s7
  %s10 = scalar_select 0, %s9, %s7
  %11 = sst [smem:[#allocation2]] %s3
  $region1: #{tpu_custom_call.1} parent=0
    #allocation3 [shape = 'u8[98304]{0}', space=vmem, size = 0x18000, scoped, tag = 'input window, operand 0, single buffered']
    #allocation4 [shape = 's32[1]{0}', space=sflag, size = 0x4, scoped, tag = 'scoped memory for tpu_custom_call.1']
    #allocation5 [shape = 's32[1]{0}', space=sflag, size = 0x4, scoped, tag = 'scoped memory for tpu_custom_call.1']
    #allocation6 [shape = 'u8[262144]{0}', space=vmem, size = 0x40000, scoped, tag = 'input window, operand 1, single buffered']
    #allocation7 [shape = 's32[1]{0}', space=sflag, size = 0x4, scoped, tag = 'scoped memory for tpu_custom_call.1']
    #allocation8 [shape = 'u8[512]{0}', space=smem, size = 0x200, scoped, tag = 'input window, operand 2, single buffered']
    %12 = vsyncpa [#allocation4], 0
    %13 = vsyncpa [#allocation7], 0
    %14 = vsyncpa [#allocation5], 0
    // Predicated region
    $region2: #{tpu_custom_call.1} parent=1 // pred_check
      _
    $region3: #{tpu_custom_call.1} parent=1 // pred_check_branch
      %16 = sbr.rel (0) target = $region5
    $region4: #{tpu_custom_call.1} parent=1 // pred_region
      %18 = vsyncadd [#allocation4], 0
      %s19 = sshll.u32 %s0, 4
      %s20 = int_to_ptr.hbm [resolvable:$true] %s19
      %s21 = sshll.u32 [#allocation3], 4
      %s22 = int_to_ptr.vmem [resolvable:$true] %s21
      %27 = dma.hbm_to_vmem [thread:$0]  %s20, 3072, %s22, [#allocation4], 512, 512, 32
    $region5: #{tpu_custom_call.1} parent=1 // pred_fallthru
      _
    // Predicated region
    $region6: #{tpu_custom_call.1} parent=1 // pred_check
      _
    $region7: #{tpu_custom_call.1} parent=1 // pred_check_branch
      %29 = sbr.rel (0) target = $region9
    $region8: #{tpu_custom_call.1} parent=1 // pred_region
      %31 = vsyncadd [#allocation7], 0
      %s32 = sshll.u32 %s1, 4
      %s33 = int_to_ptr.hbm [resolvable:$true] %s32
      %s34 = sshll.u32 [#allocation6], 4
      %s35 = int_to_ptr.vmem [resolvable:$true] %s34
      %40 = dma.hbm_to_vmem [thread:$0]  %s33, 8192, %s35, [#allocation7], 64, 64, 4
    $region9: #{tpu_custom_call.1} parent=1 // pred_fallthru
      _
    // Predicated region
    $region10: #{tpu_custom_call.1} parent=1 // pred_check
      _
    $region11: #{tpu_custom_call.1} parent=1 // pred_check_branch
      %42 = sbr.rel (0) target = $region13
    $region12: #{tpu_custom_call.1} parent=1 // pred_region
      %44 = vsyncadd [#allocation5], 0
      %s46 = sshll.u32 %s2, 4
      %s47 = int_to_ptr.vmem [resolvable:$true] %s46
      %49 = dma.vmem_to_smem %s47, 16, [#allocation8], [#allocation5]
    $region13: #{tpu_custom_call.1} parent=1 // pred_fallthru
      _
    // Predicated region
    $region14: #{tpu_custom_call.1} parent=1 // pred_check
      _
    $region15: #{tpu_custom_call.1} parent=1 // pred_check_branch
      %51 = sbr.rel (0) target = $region17
    $region16: #{tpu_custom_call.1} parent=1 // pred_region
      _
    $region17: #{tpu_custom_call.1} parent=1 // pred_fallthru
      _
    // Predicated region
    $region18: #{tpu_custom_call.1} parent=1 // pred_check
      _
    $region19: #{tpu_custom_call.1} parent=1 // pred_check_branch
      %53 = sbr.rel (0) target = $region21
    $region20: #{tpu_custom_call.1} parent=1 // pred_region
      %55 = dma.done [#allocation4], 3072
    $region21: #{tpu_custom_call.1} parent=1 // pred_fallthru
      _
    // Predicated region
    $region22: #{tpu_custom_call.1} parent=1 // pred_check
      _
    $region23: #{tpu_custom_call.1} parent=1 // pred_check_branch
      %57 = sbr.rel (0) target = $region25
    $region24: #{tpu_custom_call.1} parent=1 // pred_region
      %59 = dma.done [#allocation7], 8192
    $region25: #{tpu_custom_call.1} parent=1 // pred_fallthru
      _
    // Predicated region
    $region26: #{tpu_custom_call.1} parent=1 // pred_check
      _
    $region27: #{tpu_custom_call.1} parent=1 // pred_check_branch
      %61 = sbr.rel (0) target = $region29
    $region28: #{tpu_custom_call.1} parent=1 // pred_region
      %63 = dma.done [#allocation5], 16
    $region29: #{tpu_custom_call.1} parent=1 // pred_fallthru
      _
    %64 = sfence
    %v65 = vld [vmem:[#allocation3] sm:$0xff]
    %v66 = vld [vmem:[#allocation3 + $0x8] sm:$0xff]
    %v67 = vld [vmem:[#allocation3 + $0x10] sm:$0xff]
    %v68 = vld [vmem:[#allocation3 + $0x18] sm:$0xff]
    %v69 = vld [vmem:[#allocation3 + $0x20] sm:$0xff]
    %v70 = vld [vmem:[#allocation3 + $0x28] sm:$0xff]
    %v71 = vld [vmem:[#allocation3 + $0x30] sm:$0xff]
    %v72 = vld [vmem:[#allocation3 + $0x38] sm:$0xff]
    %v73 = vld [vmem:[#allocation3 + $0x40] sm:$0xff]
    %v74 = vld [vmem:[#allocation3 + $0x48] sm:$0xff]
    %v75 = vld [vmem:[#allocation3 + $0x50] sm:$0xff]
    %v76 = vld [vmem:[#allocation3 + $0x58] sm:$0xff]
    %v77 = vld [vmem:[#allocation3 + $0x60] sm:$0xff]
    %v78 = vld [vmem:[#allocation3 + $0x68] sm:$0xff]
    %v79 = vld [vmem:[#allocation3 + $0x70] sm:$0xff]
    %v80 = vld [vmem:[#allocation3 + $0x78] sm:$0xff]
    %v81 = vld [vmem:[#allocation3 + $0x80] sm:$0xff]
    %v82 = vld [vmem:[#allocation3 + $0x88] sm:$0xff]
    %v83 = vld [vmem:[#allocation3 + $0x90] sm:$0xff]
    %v84 = vld [vmem:[#allocation3 + $0x98] sm:$0xff]
    %v85 = vld [vmem:[#allocation3 + $0xa0] sm:$0xff]
    %v86 = vld [vmem:[#allocation3 + $0xa8] sm:$0xff]
    %v87 = vld [vmem:[#allocation3 + $0xb0] sm:$0xff]
    %v88 = vld [vmem:[#allocation3 + $0xb8] sm:$0xff]
    %v89 = vld [vmem:[#allocation6] sm:$0xf]
    %v90 = vld [vmem:[#allocation6 + $0x4] sm:$0xf]
    %v91 = vld [vmem:[#allocation6 + $0x8] sm:$0xf]
    %v92 = vld [vmem:[#allocation6 + $0xc] sm:$0xf]
    %v93 = vld [vmem:[#allocation6 + $0x10] sm:$0xf]
    %v94 = vld [vmem:[#allocation6 + $0x14] sm:$0xf]
    %v95 = vld [vmem:[#allocation6 + $0x18] sm:$0xf]
    %v96 = vld [vmem:[#allocation6 + $0x1c] sm:$0xf]
    %v97 = vld [vmem:[#allocation6 + $0x20] sm:$0xf]
    %v98 = vld [vmem:[#allocation6 + $0x24] sm:$0xf]
    %v99 = vld [vmem:[#allocation6 + $0x28] sm:$0xf]
    %v100 = vld [vmem:[#allocation6 + $0x2c] sm:$0xf]
    %v101 = vld [vmem:[#allocation6 + $0x30] sm:$0xf]
    %v102 = vld [vmem:[#allocation6 + $0x34] sm:$0xf]
    %v103 = vld [vmem:[#allocation6 + $0x38] sm:$0xf]
    %v104 = vld [vmem:[#allocation6 + $0x3c] sm:$0xf]
    %v105 = vld [vmem:[#allocation6 + $0x40] sm:$0xf]
    %v106 = vld [vmem:[#allocation6 + $0x44] sm:$0xf]
    %v107 = vld [vmem:[#allocation6 + $0x48] sm:$0xf]
    %v108 = vld [vmem:[#allocation6 + $0x4c] sm:$0xf]
    %v109 = vld [vmem:[#allocation6 + $0x50] sm:$0xf]
    %v110 = vld [vmem:[#allocation6 + $0x54] sm:$0xf]
    %v111 = vld [vmem:[#allocation6 + $0x58] sm:$0xf]
    %v112 = vld [vmem:[#allocation6 + $0x5c] sm:$0xf]
    %v113 = vld [vmem:[#allocation6 + $0x60] sm:$0xf]
    %v114 = vld [vmem:[#allocation6 + $0x64] sm:$0xf]
    %v115 = vld [vmem:[#allocation6 + $0x68] sm:$0xf]
    %v116 = vld [vmem:[#allocation6 + $0x6c] sm:$0xf]
    %v117 = vld [vmem:[#allocation6 + $0x70] sm:$0xf]
    %v118 = vld [vmem:[#allocation6 + $0x74] sm:$0xf]
    %v119 = vld [vmem:[#allocation6 + $0x78] sm:$0xf]
    %v120 = vld [vmem:[#allocation6 + $0x7c] sm:$0xf]
    %v121 = vld [vmem:[#allocation6 + $0x80] sm:$0xf]
    %v122 = vld [vmem:[#allocation6 + $0x84] sm:$0xf]
    %v123 = vld [vmem:[#allocation6 + $0x88] sm:$0xf]
    %v124 = vld [vmem:[#allocation6 + $0x8c] sm:$0xf]
    %v125 = vld [vmem:[#allocation6 + $0x90] sm:$0xf]
    %v126 = vld [vmem:[#allocation6 + $0x94] sm:$0xf]
    %v127 = vld [vmem:[#allocation6 + $0x98] sm:$0xf]
    %v128 = vld [vmem:[#allocation6 + $0x9c] sm:$0xf]
    %v129 = vld [vmem:[#allocation6 + $0xa0] sm:$0xf]
    %v130 = vld [vmem:[#allocation6 + $0xa4] sm:$0xf]
    %v131 = vld [vmem:[#allocation6 + $0xa8] sm:$0xf]
    %v132 = vld [vmem:[#allocation6 + $0xac] sm:$0xf]
    %v133 = vld [vmem:[#allocation6 + $0xb0] sm:$0xf]
    %v134 = vld [vmem:[#allocation6 + $0xb4] sm:$0xf]
    %v135 = vld [vmem:[#allocation6 + $0xb8] sm:$0xf]
    %v136 = vld [vmem:[#allocation6 + $0xbc] sm:$0xf]
    %v137 = vld [vmem:[#allocation6 + $0xc0] sm:$0xf]
    %v138 = vld [vmem:[#allocation6 + $0xc4] sm:$0xf]
    %v139 = vld [vmem:[#allocation6 + $0xc8] sm:$0xf]
    %v140 = vld [vmem:[#allocation6 + $0xcc] sm:$0xf]
    %v141 = vld [vmem:[#allocation6 + $0xd0] sm:$0xf]
    %v142 = vld [vmem:[#allocation6 + $0xd4] sm:$0xf]
    %v143 = vld [vmem:[#allocation6 + $0xd8] sm:$0xf]
    %v144 = vld [vmem:[#allocation6 + $0xdc] sm:$0xf]
    %v145 = vld [vmem:[#allocation6 + $0xe0] sm:$0xf]
    %v146 = vld [vmem:[#allocation6 + $0xe4] sm:$0xf]
    %v147 = vld [vmem:[#allocation6 + $0xe8] sm:$0xf]
    %v148 = vld [vmem:[#allocation6 + $0xec] sm:$0xf]
    %v149 = vld [vmem:[#allocation6 + $0xf0] sm:$0xf]
    %v150 = vld [vmem:[#allocation6 + $0xf4] sm:$0xf]
    %v151 = vld [vmem:[#allocation6 + $0xf8] sm:$0xf]
    %v152 = vld [vmem:[#allocation6 + $0xfc] sm:$0xf]
    %v153 = vld [vmem:[#allocation6 + $0x100] sm:$0xf]
    %v154 = vld [vmem:[#allocation6 + $0x104] sm:$0xf]
    %v155 = vld [vmem:[#allocation6 + $0x108] sm:$0xf]
    %v156 = vld [vmem:[#allocation6 + $0x10c] sm:$0xf]
    %v157 = vld [vmem:[#allocation6 + $0x110] sm:$0xf]
    %v158 = vld [vmem:[#allocation6 + $0x114] sm:$0xf]
    %v159 = vld [vmem:[#allocation6 + $0x118] sm:$0xf]
    %v160 = vld [vmem:[#allocation6 + $0x11c] sm:$0xf]
    %v161 = vld [vmem:[#allocation6 + $0x120] sm:$0xf]
    %v162 = vld [vmem:[#allocation6 + $0x124] sm:$0xf]
    %v163 = vld [vmem:[#allocation6 + $0x128] sm:$0xf]
    %v164 = vld [vmem:[#allocation6 + $0x12c] sm:$0xf]
    %v165 = vld [vmem:[#allocation6 + $0x130] sm:$0xf]
    %v166 = vld [vmem:[#allocation6 + $0x134] sm:$0xf]
    %v167 = vld [vmem:[#allocation6 + $0x138] sm:$0xf]
    %v168 = vld [vmem:[#allocation6 + $0x13c] sm:$0xf]
    %v169 = vld [vmem:[#allocation6 + $0x140] sm:$0xf]
    %v170 = vld [vmem:[#allocation6 + $0x144] sm:$0xf]
    %v171 = vld [vmem:[#allocation6 + $0x148] sm:$0xf]
    %v172 = vld [vmem:[#allocation6 + $0x14c] sm:$0xf]
    %v173 = vld [vmem:[#allocation6 + $0x150] sm:$0xf]
    %v174 = vld [vmem:[#allocation6 + $0x154] sm:$0xf]
    %v175 = vld [vmem:[#allocation6 + $0x158] sm:$0xf]
    %v176 = vld [vmem:[#allocation6 + $0x15c] sm:$0xf]
    %v177 = vld [vmem:[#allocation6 + $0x160] sm:$0xf]
    %v178 = vld [vmem:[#allocation6 + $0x164] sm:$0xf]
    %v179 = vld [vmem:[#allocation6 + $0x168] sm:$0xf]
    %v180 = vld [vmem:[#allocation6 + $0x16c] sm:$0xf]
    %v181 = vld [vmem:[#allocation6 + $0x170] sm:$0xf]
    %v182 = vld [vmem:[#allocation6 + $0x174] sm:$0xf]
    %v183 = vld [vmem:[#allocation6 + $0x178] sm:$0xf]
    %v184 = vld [vmem:[#allocation6 + $0x17c] sm:$0xf]
    %v185 = vld [vmem:[#allocation6 + $0x180] sm:$0xf]
    %v186 = vld [vmem:[#allocation6 + $0x184] sm:$0xf]
    %v187 = vld [vmem:[#allocation6 + $0x188] sm:$0xf]
    %v188 = vld [vmem:[#allocation6 + $0x18c] sm:$0xf]
    %v189 = vld [vmem:[#allocation6 + $0x190] sm:$0xf]
    %v190 = vld [vmem:[#allocation6 + $0x194] sm:$0xf]
    %v191 = vld [vmem:[#allocation6 + $0x198] sm:$0xf]
    %v192 = vld [vmem:[#allocation6 + $0x19c] sm:$0xf]
    %v193 = vld [vmem:[#allocation6 + $0x1a0] sm:$0xf]
    %v194 = vld [vmem:[#allocation6 + $0x1a4] sm:$0xf]
    %v195 = vld [vmem:[#allocation6 + $0x1a8] sm:$0xf]
    %v196 = vld [vmem:[#allocation6 + $0x1ac] sm:$0xf]
    %v197 = vld [vmem:[#allocation6 + $0x1b0] sm:$0xf]
    %v198 = vld [vmem:[#allocation6 + $0x1b4] sm:$0xf]
    %v199 = vld [vmem:[#allocation6 + $0x1b8] sm:$0xf]
    %v200 = vld [vmem:[#allocation6 + $0x1bc] sm:$0xf]
    %v201 = vld [vmem:[#allocation6 + $0x1c0] sm:$0xf]
    %v202 = vld [vmem:[#allocation6 + $0x1c4] sm:$0xf]
    %v203 = vld [vmem:[#allocation6 + $0x1c8] sm:$0xf]
    %v204 = vld [vmem:[#allocation6 + $0x1cc] sm:$0xf]
    %v205 = vld [vmem:[#allocation6 + $0x1d0] sm:$0xf]
    %v206 = vld [vmem:[#allocation6 + $0x1d4] sm:$0xf]
    %v207 = vld [vmem:[#allocation6 + $0x1d8] sm:$0xf]
    %v208 = vld [vmem:[#allocation6 + $0x1dc] sm:$0xf]
    %v209 = vld [vmem:[#allocation6 + $0x1e0] sm:$0xf]
    %v210 = vld [vmem:[#allocation6 + $0x1e4] sm:$0xf]
    %v211 = vld [vmem:[#allocation6 + $0x1e8] sm:$0xf]
    %v212 = vld [vmem:[#allocation6 + $0x1ec] sm:$0xf]
    %v213 = vld [vmem:[#allocation6 + $0x1f0] sm:$0xf]
    %v214 = vld [vmem:[#allocation6 + $0x1f4] sm:$0xf]
    %v215 = vld [vmem:[#allocation6 + $0x1f8] sm:$0xf]
    %v216 = vld [vmem:[#allocation6 + $0x1fc] sm:$0xf]
    %v241 = vunpack.c.l.b16 %v65
    %v242 = vunpack.c.h.b16 %v65
    %v243 = vunpack.c.l.b16 %v66
    %v244 = vunpack.c.h.b16 %v66
    %v245 = vunpack.c.l.b16 %v67
    %v246 = vunpack.c.h.b16 %v67
    %v247 = vunpack.c.l.b16 %v68
    %v248 = vunpack.c.h.b16 %v68
    %v249 = vunpack.c.l.b16 %v69
    %v250 = vunpack.c.h.b16 %v69
    %v251 = vunpack.c.l.b16 %v70
    %v252 = vunpack.c.h.b16 %v70
    %v253 = vunpack.c.l.b16 %v71
    %v254 = vunpack.c.h.b16 %v71
    %v255 = vunpack.c.l.b16 %v72
    %v256 = vunpack.c.h.b16 %v72
    %v257 = vunpack.c.l.b16 %v73
    %v258 = vunpack.c.h.b16 %v73
    %v259 = vunpack.c.l.b16 %v74
    %v260 = vunpack.c.h.b16 %v74
    %v261 = vunpack.c.l.b16 %v75
    %v262 = vunpack.c.h.b16 %v75
    %v263 = vunpack.c.l.b16 %v76
    %v264 = vunpack.c.h.b16 %v76
    %v265 = vunpack.c.l.b16 %v77
    %v266 = vunpack.c.h.b16 %v77
    %v267 = vunpack.c.l.b16 %v78
    %v268 = vunpack.c.h.b16 %v78
    %v269 = vunpack.c.l.b16 %v79
    %v270 = vunpack.c.h.b16 %v79
    %v271 = vunpack.c.l.b16 %v80
    %v272 = vunpack.c.h.b16 %v80
    %v273 = vunpack.c.l.b16 %v81
    %v274 = vunpack.c.h.b16 %v81
    %v275 = vunpack.c.l.b16 %v82
    %v276 = vunpack.c.h.b16 %v82
    %v277 = vunpack.c.l.b16 %v83
    %v278 = vunpack.c.h.b16 %v83
    %v279 = vunpack.c.l.b16 %v84
    %v280 = vunpack.c.h.b16 %v84
    %v281 = vunpack.c.l.b16 %v85
    %v282 = vunpack.c.h.b16 %v85
    %v283 = vunpack.c.l.b16 %v86
    %v284 = vunpack.c.h.b16 %v86
    %v285 = vunpack.c.l.b16 %v87
    %v286 = vunpack.c.h.b16 %v87
    %v287 = vunpack.c.l.b16 %v88
    %v288 = vunpack.c.h.b16 %v88
    %v289 = vpack.c.b16 %v249, %v241
    %v290 = vpack.c.b16 %v250, %v242
    %v291 = vpack.c.b16 %v251, %v243
    %v292 = vpack.c.b16 %v252, %v244
    %v293 = vpack.c.b16 %v253, %v245
    %v294 = vpack.c.b16 %v254, %v246
    %v295 = vpack.c.b16 %v255, %v247
    %v296 = vpack.c.b16 %v256, %v248
    %v297 = vpack.c.b16 %v265, %v257
    %v298 = vpack.c.b16 %v266, %v258
    %v299 = vpack.c.b16 %v267, %v259
    %v300 = vpack.c.b16 %v268, %v260
    %v301 = vpack.c.b16 %v269, %v261
    %v302 = vpack.c.b16 %v270, %v262
    %v303 = vpack.c.b16 %v271, %v263
    %v304 = vpack.c.b16 %v272, %v264
    %v305 = vpack.c.b16 %v281, %v273
    %v306 = vpack.c.b16 %v282, %v274
    %v307 = vpack.c.b16 %v283, %v275
    %v308 = vpack.c.b16 %v284, %v276
    %v309 = vpack.c.b16 %v285, %v277
    %v310 = vpack.c.b16 %v286, %v278
    %v311 = vpack.c.b16 %v287, %v279
    %v312 = vpack.c.b16 %v288, %v280
    %v465 = vunpack.c.l.b16 %v89
    %v466 = vunpack.c.l.b16 %v90
    %v467 = vunpack.c.l.b16 %v91
    %v468 = vunpack.c.l.b16 %v92
    %v469 = vunpack.c.l.b16 %v93
    %v470 = vunpack.c.l.b16 %v94
    %v471 = vunpack.c.l.b16 %v95
    %v472 = vunpack.c.l.b16 %v96
    %v473 = vunpack.c.l.b16 %v97
    %v474 = vunpack.c.l.b16 %v98
    %v475 = vunpack.c.l.b16 %v99
    %v476 = vunpack.c.l.b16 %v100
    %v477 = vunpack.c.l.b16 %v101
    %v478 = vunpack.c.l.b16 %v102
    %v479 = vunpack.c.l.b16 %v103
    %v480 = vunpack.c.l.b16 %v104
    %v481 = vunpack.c.l.b16 %v105
    %v482 = vunpack.c.l.b16 %v106
    %v483 = vunpack.c.l.b16 %v107
    %v484 = vunpack.c.l.b16 %v108
    %v485 = vunpack.c.l.b16 %v109
    %v486 = vunpack.c.l.b16 %v110
    %v487 = vunpack.c.l.b16 %v111
    %v488 = vunpack.c.l.b16 %v112
    %v489 = vunpack.c.l.b16 %v113
    %v490 = vunpack.c.l.b16 %v114
    %v491 = vunpack.c.l.b16 %v115
    %v492 = vunpack.c.l.b16 %v116
    %v493 = vunpack.c.l.b16 %v117
    %v494 = vunpack.c.l.b16 %v118
    %v495 = vunpack.c.l.b16 %v119
    %v496 = vunpack.c.l.b16 %v120
    %v497 = vunpack.c.l.b16 %v121
    %v498 = vunpack.c.l.b16 %v122
    %v499 = vunpack.c.l.b16 %v123
    %v500 = vunpack.c.l.b16 %v124
    %v501 = vunpack.c.l.b16 %v125
    %v502 = vunpack.c.l.b16 %v126
    %v503 = vunpack.c.l.b16 %v127
    %v504 = vunpack.c.l.b16 %v128
    %v505 = vunpack.c.l.b16 %v129
    %v506 = vunpack.c.l.b16 %v130
    %v507 = vunpack.c.l.b16 %v131
    %v508 = vunpack.c.l.b16 %v132
    %v509 = vunpack.c.l.b16 %v133
    %v510 = vunpack.c.l.b16 %v134
    %v511 = vunpack.c.l.b16 %v135
    %v512 = vunpack.c.l.b16 %v136
    %v513 = vunpack.c.l.b16 %v137
    %v514 = vunpack.c.l.b16 %v138
    %v515 = vunpack.c.l.b16 %v139
    %v516 = vunpack.c.l.b16 %v140
    %v517 = vunpack.c.l.b16 %v141
    %v518 = vunpack.c.l.b16 %v142
    %v519 = vunpack.c.l.b16 %v143
    %v520 = vunpack.c.l.b16 %v144
    %v521 = vunpack.c.l.b16 %v145
    %v522 = vunpack.c.l.b16 %v146
    %v523 = vunpack.c.l.b16 %v147
    %v524 = vunpack.c.l.b16 %v148
    %v525 = vunpack.c.l.b16 %v149
    %v526 = vunpack.c.l.b16 %v150
    %v527 = vunpack.c.l.b16 %v151
    %v528 = vunpack.c.l.b16 %v152
    %v529 = vunpack.c.l.b16 %v153
    %v530 = vunpack.c.l.b16 %v154
    %v531 = vunpack.c.l.b16 %v155
    %v532 = vunpack.c.l.b16 %v156
    %v533 = vunpack.c.l.b16 %v157
    %v534 = vunpack.c.l.b16 %v158
    %v535 = vunpack.c.l.b16 %v159
    %v536 = vunpack.c.l.b16 %v160
    %v537 = vunpack.c.l.b16 %v161
    %v538 = vunpack.c.l.b16 %v162
    %v539 = vunpack.c.l.b16 %v163
    %v540 = vunpack.c.l.b16 %v164
    %v541 = vunpack.c.l.b16 %v165
    %v542 = vunpack.c.l.b16 %v166
    %v543 = vunpack.c.l.b16 %v167
    %v544 = vunpack.c.l.b16 %v168
    %v545 = vunpack.c.l.b16 %v169
    %v546 = vunpack.c.l.b16 %v170
    %v547 = vunpack.c.l.b16 %v171
    %v548 = vunpack.c.l.b16 %v172
    %v549 = vunpack.c.l.b16 %v173
    %v550 = vunpack.c.l.b16 %v174
    %v551 = vunpack.c.l.b16 %v175
    %v552 = vunpack.c.l.b16 %v176
    %v553 = vunpack.c.l.b16 %v177
    %v554 = vunpack.c.l.b16 %v178
    %v555 = vunpack.c.l.b16 %v179
    %v556 = vunpack.c.l.b16 %v180
    %v557 = vunpack.c.l.b16 %v181
    %v558 = vunpack.c.l.b16 %v182
    %v559 = vunpack.c.l.b16 %v183
    %v560 = vunpack.c.l.b16 %v184
    %v561 = vunpack.c.l.b16 %v185
    %v562 = vunpack.c.l.b16 %v186
    %v563 = vunpack.c.l.b16 %v187
    %v564 = vunpack.c.l.b16 %v188
    %v565 = vunpack.c.l.b16 %v189
    %v566 = vunpack.c.l.b16 %v190
    %v567 = vunpack.c.l.b16 %v191
    %v568 = vunpack.c.l.b16 %v192
    %v569 = vunpack.c.l.b16 %v193
    %v570 = vunpack.c.l.b16 %v194
    %v571 = vunpack.c.l.b16 %v195
    %v572 = vunpack.c.l.b16 %v196
    %v573 = vunpack.c.l.b16 %v197
    %v574 = vunpack.c.l.b16 %v198
    %v575 = vunpack.c.l.b16 %v199
    %v576 = vunpack.c.l.b16 %v200
    %v577 = vunpack.c.l.b16 %v201
    %v578 = vunpack.c.l.b16 %v202
    %v579 = vunpack.c.l.b16 %v203
    %v580 = vunpack.c.l.b16 %v204
    %v581 = vunpack.c.l.b16 %v205
    %v582 = vunpack.c.l.b16 %v206
    %v583 = vunpack.c.l.b16 %v207
    %v584 = vunpack.c.l.b16 %v208
    %v585 = vunpack.c.l.b16 %v209
    %v586 = vunpack.c.l.b16 %v210
    %v587 = vunpack.c.l.b16 %v211
    %v588 = vunpack.c.l.b16 %v212
    %v589 = vunpack.c.l.b16 %v213
    %v590 = vunpack.c.l.b16 %v214
    %v591 = vunpack.c.l.b16 %v215
    %v592 = vunpack.c.l.b16 %v216
    %v593 = vpack.c.b16 %v466, %v465
    %v594 = vpack.c.b16 %v468, %v467
    %v595 = vpack.c.b16 %v470, %v469
    %v596 = vpack.c.b16 %v472, %v471
    %v597 = vpack.c.b16 %v474, %v473
    %v598 = vpack.c.b16 %v476, %v475
    %v599 = vpack.c.b16 %v478, %v477
    %v600 = vpack.c.b16 %v480, %v479
    %v601 = vpack.c.b16 %v482, %v481
    %v602 = vpack.c.b16 %v484, %v483
    %v603 = vpack.c.b16 %v486, %v485
    %v604 = vpack.c.b16 %v488, %v487
    %v605 = vpack.c.b16 %v490, %v489
    %v606 = vpack.c.b16 %v492, %v491
    %v607 = vpack.c.b16 %v494, %v493
    %v608 = vpack.c.b16 %v496, %v495
    %v609 = vpack.c.b16 %v498, %v497
    %v610 = vpack.c.b16 %v500, %v499
    %v611 = vpack.c.b16 %v502, %v501
    %v612 = vpack.c.b16 %v504, %v503
    %v613 = vpack.c.b16 %v506, %v505
    %v614 = vpack.c.b16 %v508, %v507
    %v615 = vpack.c.b16 %v510, %v509
    %v616 = vpack.c.b16 %v512, %v511
    %v617 = vpack.c.b16 %v514, %v513
    %v618 = vpack.c.b16 %v516, %v515
    %v619 = vpack.c.b16 %v518, %v517
    %v620 = vpack.c.b16 %v520, %v519
    %v621 = vpack.c.b16 %v522, %v521
    %v622 = vpack.c.b16 %v524, %v523
    %v623 = vpack.c.b16 %v526, %v525
    %v624 = vpack.c.b16 %v528, %v527
    %v625 = vpack.c.b16 %v530, %v529
    %v626 = vpack.c.b16 %v532, %v531
    %v627 = vpack.c.b16 %v534, %v533
    %v628 = vpack.c.b16 %v536, %v535
    %v629 = vpack.c.b16 %v538, %v537
    %v630 = vpack.c.b16 %v540, %v539
    %v631 = vpack.c.b16 %v542, %v541
    %v632 = vpack.c.b16 %v544, %v543
    %v633 = vpack.c.b16 %v546, %v545
    %v634 = vpack.c.b16 %v548, %v547
    %v635 = vpack.c.b16 %v550, %v549
    %v636 = vpack.c.b16 %v552, %v551
    %v637 = vpack.c.b16 %v554, %v553
    %v638 = vpack.c.b16 %v556, %v555
    %v639 = vpack.c.b16 %v558, %v557
    %v640 = vpack.c.b16 %v560, %v559
    %v641 = vpack.c.b16 %v562, %v561
    %v642 = vpack.c.b16 %v564, %v563
    %v643 = vpack.c.b16 %v566, %v565
    %v644 = vpack.c.b16 %v568, %v567
    %v645 = vpack.c.b16 %v570, %v569
    %v646 = vpack.c.b16 %v572, %v571
    %v647 = vpack.c.b16 %v574, %v573
    %v648 = vpack.c.b16 %v576, %v575
    %v649 = vpack.c.b16 %v578, %v577
    %v650 = vpack.c.b16 %v580, %v579
    %v651 = vpack.c.b16 %v582, %v581
    %v652 = vpack.c.b16 %v584, %v583
    %v653 = vpack.c.b16 %v586, %v585
    %v654 = vpack.c.b16 %v588, %v587
    %v655 = vpack.c.b16 %v590, %v589
    %v656 = vpack.c.b16 %v592, %v591
    %721 = vmatpush.bf16.msra.mxu0 %v600
    %722 = vmatpush.bf16.msra.mxu0 %v599
    %723 = vmatpush.bf16.msra.mxu0 %v598
    %724 = vmatpush.bf16.msra.mxu0 %v597
    %725 = vmatpush.bf16.msra.mxu0 %v596
    %726 = vmatpush.bf16.msra.mxu0 %v595
    %727 = vmatpush.bf16.msra.mxu0 %v594
    %728 = vmatpush.bf16.msra.mxu0 %v593
    %729 = vmatmul.bf16.gmra.mxu0 %v289
    %v730 = vpop.f32.mrf.mxu0
    %v731 = vadd.f32 0.0, %v730
    %v732 = vpop.f32.mrf.mxu0
    %v733 = vadd.f32 0.0, %v732
    %734 = vmatmul.bf16.gmra.mxu0 %v297
    %v735 = vpop.f32.mrf.mxu0
    %v736 = vadd.f32 0.0, %v735
    %v737 = vpop.f32.mrf.mxu0
    %v738 = vadd.f32 0.0, %v737
    %739 = vmatmul.bf16.gmra.mxu0 %v305
    %v740 = vpop.f32.mrf.mxu0
    %v741 = vadd.f32 0.0, %v740
    %v742 = vpop.f32.mrf.mxu0
    %v743 = vadd.f32 0.0, %v742
    %744 = vdwg.mxu0
    %745 = vmatpush.bf16.msra.mxu0 %v608
    %746 = vmatpush.bf16.msra.mxu0 %v607
    %747 = vmatpush.bf16.msra.mxu0 %v606
    %748 = vmatpush.bf16.msra.mxu0 %v605
    %749 = vmatpush.bf16.msra.mxu0 %v604
    %750 = vmatpush.bf16.msra.mxu0 %v603
    %751 = vmatpush.bf16.msra.mxu0 %v602
    %752 = vmatpush.bf16.msra.mxu0 %v601
    %753 = vmatmul.bf16.gmra.mxu0 %v290
    %v754 = vpop.f32.mrf.mxu0
    %v755 = vadd.f32 %v731, %v754
    %v756 = vpop.f32.mrf.mxu0
    %v757 = vadd.f32 %v733, %v756
    %758 = vmatmul.bf16.gmra.mxu0 %v298
    %v759 = vpop.f32.mrf.mxu0
    %v760 = vadd.f32 %v736, %v759
    %v761 = vpop.f32.mrf.mxu0
    %v762 = vadd.f32 %v738, %v761
    %763 = vmatmul.bf16.gmra.mxu0 %v306
    %v764 = vpop.f32.mrf.mxu0
    %v765 = vadd.f32 %v741, %v764
    %v766 = vpop.f32.mrf.mxu0
    %v767 = vadd.f32 %v743, %v766
    %768 = vdwg.mxu0
    %769 = vmatpush.bf16.msra.mxu0 %v616
    %770 = vmatpush.bf16.msra.mxu0 %v615
    %771 = vmatpush.bf16.msra.mxu0 %v614
    %772 = vmatpush.bf16.msra.mxu0 %v613
    %773 = vmatpush.bf16.msra.mxu0 %v612
    %774 = vmatpush.bf16.msra.mxu0 %v611
    %775 = vmatpush.bf16.msra.mxu0 %v610
    %776 = vmatpush.bf16.msra.mxu0 %v609
    %777 = vmatmul.bf16.gmra.mxu0 %v291
    %v778 = vpop.f32.mrf.mxu0
    %v779 = vadd.f32 %v755, %v778
    %v780 = vpop.f32.mrf.mxu0
    %v781 = vadd.f32 %v757, %v780
    %782 = vmatmul.bf16.gmra.mxu0 %v299
    %v783 = vpop.f32.mrf.mxu0
    %v784 = vadd.f32 %v760, %v783
    %v785 = vpop.f32.mrf.mxu0
    %v786 = vadd.f32 %v762, %v785
    %787 = vmatmul.bf16.gmra.mxu0 %v307
    %v788 = vpop.f32.mrf.mxu0
    %v789 = vadd.f32 %v765, %v788
    %v790 = vpop.f32.mrf.mxu0
    %v791 = vadd.f32 %v767, %v790
    %792 = vdwg.mxu0
    %793 = vmatpush.bf16.msra.mxu0 %v624
    %794 = vmatpush.bf16.msra.mxu0 %v623
    %795 = vmatpush.bf16.msra.mxu0 %v622
    %796 = vmatpush.bf16.msra.mxu0 %v621
    %797 = vmatpush.bf16.msra.mxu0 %v620
    %798 = vmatpush.bf16.msra.mxu0 %v619
    %799 = vmatpush.bf16.msra.mxu0 %v618
    %800 = vmatpush.bf16.msra.mxu0 %v617
    %801 = vmatmul.bf16.gmra.mxu0 %v292
    %v802 = vpop.f32.mrf.mxu0
    %v803 = vadd.f32 %v779, %v802
    %v804 = vpop.f32.mrf.mxu0
    %v805 = vadd.f32 %v781, %v804
    %806 = vmatmul.bf16.gmra.mxu0 %v300
    %v807 = vpop.f32.mrf.mxu0
    %v808 = vadd.f32 %v784, %v807
    %v809 = vpop.f32.mrf.mxu0
    %v810 = vadd.f32 %v786, %v809
    %811 = vmatmul.bf16.gmra.mxu0 %v308
    %v812 = vpop.f32.mrf.mxu0
    %v813 = vadd.f32 %v789, %v812
    %v814 = vpop.f32.mrf.mxu0
    %v815 = vadd.f32 %v791, %v814
    %816 = vdwg.mxu0
    %817 = vmatpush.bf16.msra.mxu0 %v632
    %818 = vmatpush.bf16.msra.mxu0 %v631
    %819 = vmatpush.bf16.msra.mxu0 %v630
    %820 = vmatpush.bf16.msra.mxu0 %v629
    %821 = vmatpush.bf16.msra.mxu0 %v628
    %822 = vmatpush.bf16.msra.mxu0 %v627
    %823 = vmatpush.bf16.msra.mxu0 %v626
    %824 = vmatpush.bf16.msra.mxu0 %v625
    %825 = vmatmul.bf16.gmra.mxu0 %v293
    %v826 = vpop.f32.mrf.mxu0
    %v827 = vadd.f32 %v803, %v826
    %v828 = vpop.f32.mrf.mxu0
    %v829 = vadd.f32 %v805, %v828
    %830 = vmatmul.bf16.gmra.mxu0 %v301
    %v831 = vpop.f32.mrf.mxu0
    %v832 = vadd.f32 %v808, %v831
    %v833 = vpop.f32.mrf.mxu0
    %v834 = vadd.f32 %v810, %v833
    %835 = vmatmul.bf16.gmra.mxu0 %v309
    %v836 = vpop.f32.mrf.mxu0
    %v837 = vadd.f32 %v813, %v836
    %v838 = vpop.f32.mrf.mxu0
    %v839 = vadd.f32 %v815, %v838
    %840 = vdwg.mxu0
    %841 = vmatpush.bf16.msra.mxu0 %v640
    %842 = vmatpush.bf16.msra.mxu0 %v639
    %843 = vmatpush.bf16.msra.mxu0 %v638
    %844 = vmatpush.bf16.msra.mxu0 %v637
    %845 = vmatpush.bf16.msra.mxu0 %v636
    %846 = vmatpush.bf16.msra.mxu0 %v635
    %847 = vmatpush.bf16.msra.mxu0 %v634
    %848 = vmatpush.bf16.msra.mxu0 %v633
    %849 = vmatmul.bf16.gmra.mxu0 %v294
    %v850 = vpop.f32.mrf.mxu0
    %v851 = vadd.f32 %v827, %v850
    %v852 = vpop.f32.mrf.mxu0
    %v853 = vadd.f32 %v829, %v852
    %854 = vmatmul.bf16.gmra.mxu0 %v302
    %v855 = vpop.f32.mrf.mxu0
    %v856 = vadd.f32 %v832, %v855
    %v857 = vpop.f32.mrf.mxu0
    %v858 = vadd.f32 %v834, %v857
    %859 = vmatmul.bf16.gmra.mxu0 %v310
    %v860 = vpop.f32.mrf.mxu0
    %v861 = vadd.f32 %v837, %v860
    %v862 = vpop.f32.mrf.mxu0
    %v863 = vadd.f32 %v839, %v862
    %864 = vdwg.mxu0
    %865 = vmatpush.bf16.msra.mxu0 %v648
    %866 = vmatpush.bf16.msra.mxu0 %v647
    %867 = vmatpush.bf16.msra.mxu0 %v646
    %868 = vmatpush.bf16.msra.mxu0 %v645
    %869 = vmatpush.bf16.msra.mxu0 %v644
    %870 = vmatpush.bf16.msra.mxu0 %v643
    %871 = vmatpush.bf16.msra.mxu0 %v642
    %872 = vmatpush.bf16.msra.mxu0 %v641
    %873 = vmatmul.bf16.gmra.mxu0 %v295
    %v874 = vpop.f32.mrf.mxu0
    %v875 = vadd.f32 %v851, %v874
    %v876 = vpop.f32.mrf.mxu0
    %v877 = vadd.f32 %v853, %v876
    %878 = vmatmul.bf16.gmra.mxu0 %v303
    %v879 = vpop.f32.mrf.mxu0
    %v880 = vadd.f32 %v856, %v879
    %v881 = vpop.f32.mrf.mxu0
    %v882 = vadd.f32 %v858, %v881
    %883 = vmatmul.bf16.gmra.mxu0 %v311
    %v884 = vpop.f32.mrf.mxu0
    %v885 = vadd.f32 %v861, %v884
    %v886 = vpop.f32.mrf.mxu0
    %v887 = vadd.f32 %v863, %v886
    %888 = vdwg.mxu0
    %889 = vmatpush.bf16.msra.mxu0 %v656
    %890 = vmatpush.bf16.msra.mxu0 %v655
    %891 = vmatpush.bf16.msra.mxu0 %v654
    %892 = vmatpush.bf16.msra.mxu0 %v653
    %893 = vmatpush.bf16.msra.mxu0 %v652
    %894 = vmatpush.bf16.msra.mxu0 %v651
    %895 = vmatpush.bf16.msra.mxu0 %v650
    %896 = vmatpush.bf16.msra.mxu0 %v649
    %897 = vmatmul.bf16.gmra.mxu0 %v296
    %v898 = vpop.f32.mrf.mxu0
    %v899 = vadd.f32 %v875, %v898
    %v900 = vpop.f32.mrf.mxu0
    %v901 = vadd.f32 %v877, %v900
    %902 = vmatmul.bf16.gmra.mxu0 %v304
    %v903 = vpop.f32.mrf.mxu0
    %v904 = vadd.f32 %v880, %v903
    %v905 = vpop.f32.mrf.mxu0
    %v906 = vadd.f32 %v882, %v905
    %907 = vmatmul.bf16.gmra.mxu0 %v312
    %v908 = vpop.f32.mrf.mxu0
    %v909 = vadd.f32 %v885, %v908
    %v910 = vpop.f32.mrf.mxu0
    %v911 = vadd.f32 %v887, %v910
    %912 = vdwg.mxu0
    %s913 = sld [smem:[#allocation8]]
    %s914 = sld [smem:[#allocation8 + $0x1]]
    %s915 = sld [smem:[#allocation8 + $0x2]]
    %s916 = sld [smem:[#allocation2]]
    %v917 = vadd.f32 %v899, 1e-06
    %v918 = vadd.f32 %v901, 1e-06
    %v919 = vmul.f32 %v917, %v917
    %v920 = vmul.f32 %v918, %v918
    %921 = vadd.xlane.f32.xlu0 %v919
    %v922 = vpop.xlane.xlu0 %921
    %923 = vadd.xlane.f32.xlu0 %v920
    %v924 = vpop.xlane.xlu0 %923
    %v925 = vrsqrt.pop %v922
    %v926 = vmul.f32 %v925, %v922
    %v927 = vmul.f32 %v926, %v925
    %v928 = vmul.f32 0.5, %v927
    %v929 = vsub.f32 1.5, %v928
    %v930 = vmul.f32 %v925, %v929
    %v931 = vmul.f32 %v922, %v930
    %vm932 = vcmp.eq.f32.partialorder %v922, inf
    %v933 = vsel %vm932, %v922, %v931
    %vm934 = vcmp.eq.f32.partialorder %v922, 0.0
    %v935 = vand.u32 %v922, 2147483648
    %v936 = vsel %vm934, %v935, %v933
    %v937 = vrsqrt.pop %v924
    %v938 = vmul.f32 %v937, %v924
    %v939 = vmul.f32 %v938, %v937
    %v940 = vmul.f32 0.5, %v939
    %v941 = vsub.f32 1.5, %v940
    %v942 = vmul.f32 %v937, %v941
    %v943 = vmul.f32 %v924, %v942
    %vm944 = vcmp.eq.f32.partialorder %v924, inf
    %v945 = vsel %vm944, %v924, %v943
    %vm946 = vcmp.eq.f32.partialorder %v924, 0.0
    %v947 = vand.u32 %v924, 2147483648
    %v948 = vsel %vm946, %v947, %v945
    %v949 = vadd.f32 %v904, 1e-06
    %v950 = vadd.f32 %v906, 1e-06
    %v951 = vmul.f32 %v949, %v949
    %v952 = vmul.f32 %v950, %v950
    %953 = vadd.xlane.f32.xlu0 %v951
    %v954 = vpop.xlane.xlu0 %953
    %955 = vadd.xlane.f32.xlu0 %v952
    %v956 = vpop.xlane.xlu0 %955
    %v957 = vrsqrt.pop %v954
    %v958 = vmul.f32 %v957, %v954
    %v959 = vmul.f32 %v958, %v957
    %v960 = vmul.f32 0.5, %v959
    %v961 = vsub.f32 1.5, %v960
    %v962 = vmul.f32 %v957, %v961
    %v963 = vmul.f32 %v954, %v962
    %vm964 = vcmp.eq.f32.partialorder %v954, inf
    %v965 = vsel %vm964, %v954, %v963
    %vm966 = vcmp.eq.f32.partialorder %v954, 0.0
    %v967 = vand.u32 %v954, 2147483648
    %v968 = vsel %vm966, %v967, %v965
    %v969 = vrsqrt.pop %v956
    %v970 = vmul.f32 %v969, %v956
    %v971 = vmul.f32 %v970, %v969
    %v972 = vmul.f32 0.5, %v971
    %v973 = vsub.f32 1.5, %v972
    %v974 = vmul.f32 %v969, %v973
    %v975 = vmul.f32 %v956, %v974
    %vm976 = vcmp.eq.f32.partialorder %v956, inf
    %v977 = vsel %vm976, %v956, %v975
    %vm978 = vcmp.eq.f32.partialorder %v956, 0.0
    %v979 = vand.u32 %v956, 2147483648
    %v980 = vsel %vm978, %v979, %v977
    %v981 = vadd.f32 %v909, 1e-06
    %v982 = vadd.f32 %v911, 1e-06
    %v983 = vmul.f32 %v981, %v981
    %v984 = vmul.f32 %v982, %v982
    %985 = vadd.xlane.f32.xlu0 %v983
    %v986 = vpop.xlane.xlu0 %985
    %987 = vadd.xlane.f32.xlu0 %v984
    %v988 = vpop.xlane.xlu0 %987
    %v989 = vrsqrt.pop %v986
    %v990 = vmul.f32 %v989, %v986
    %v991 = vmul.f32 %v990, %v989
    %v992 = vmul.f32 0.5, %v991
    %v993 = vsub.f32 1.5, %v992
    %v994 = vmul.f32 %v989, %v993
    %v995 = vmul.f32 %v986, %v994
    %vm996 = vcmp.eq.f32.partialorder %v986, inf
    %v997 = vsel %vm996, %v986, %v995
    %vm998 = vcmp.eq.f32.partialorder %v986, 0.0
    %v999 = vand.u32 %v986, 2147483648
    %v1000 = vsel %vm998, %v999, %v997
    %v1001 = vrsqrt.pop %v988
    %v1002 = vmul.f32 %v1001, %v988
    %v1003 = vmul.f32 %v1002, %v1001
    %v1004 = vmul.f32 0.5, %v1003
    %v1005 = vsub.f32 1.5, %v1004
    %v1006 = vmul.f32 %v1001, %v1005
    %v1007 = vmul.f32 %v988, %v1006
    %vm1008 = vcmp.eq.f32.partialorder %v988, inf
    %v1009 = vsel %vm1008, %v988, %v1007
    %vm1010 = vcmp.eq.f32.partialorder %v988, 0.0
    %v1011 = vand.u32 %v988, 2147483648
    %v1012 = vsel %vm1010, %v1011, %v1009
    %vm1013 = vcmask 7168
    %1014 = vst.msk [vmem:[%s5] sm:$0xff] %vm1013, %v936
    %1015 = vst.msk [vmem:[%s5 + $0x8] sm:$0xff] %vm1013, %v948
    %vm1016 = vcmask 15368
    %1017 = vst.msk [vmem:[%s5] sm:$0xff] %vm1016, %v968
    %1018 = vst.msk [vmem:[%s5 + $0x8] sm:$0xff] %vm1016, %v980
    %vm1019 = vcmask 23568
    %1020 = vst.msk [vmem:[%s5] sm:$0xff] %vm1019, %v1000
    %1021 = vst.msk [vmem:[%s5 + $0x8] sm:$0xff] %vm1019, %v1012
    %v1022 = vstv %s913
    %v1023 = vmul.f32 %v936, %v1022
    %v1024 = vmul.f32 %v948, %v1022
    %v1025 = vstv %s914
    %v1026 = vmul.f32 %v968, %v1025
    %v1027 = vmul.f32 %v980, %v1025
    %v1028 = vadd.f32 %v1023, %v1026
    %v1029 = vadd.f32 %v1024, %v1027
    %v1030 = vstv %s915
    %v1031 = vmul.f32 %v1000, %v1030
    %v1032 = vmul.f32 %v1012, %v1030
    %v1033 = vadd.f32 %v1028, %v1031
    %v1034 = vadd.f32 %v1029, %v1032
    %v1035 = vstv %s916
    %v1036 = vadd.f32 %v1033, %v1035
    %v1037 = vadd.f32 %v1034, %v1035
    %1038 = vst.msk [vmem:[%s4] sm:$0xff] %vm1013, %v1036
    %1039 = vst.msk [vmem:[%s4 + $0x8] sm:$0xff] %vm1013, %v1037
    // Predicated region
    $region30: #{tpu_custom_call.1} parent=1 // pred_check
      _
    $region31: #{tpu_custom_call.1} parent=1 // pred_check_branch
      %1041 = sbr.rel (0) target = $region33
    $region32: #{tpu_custom_call.1} parent=1 // pred_region
      _
    $region33: #{tpu_custom_call.1} parent=1 // pred_fallthru
      _
    // Predicated region
    $region34: #{tpu_custom_call.1} parent=1 // pred_check
      _
    $region35: #{tpu_custom_call.1} parent=1 // pred_check_branch
      %1043 = sbr.rel (0) target = $region37
    $region36: #{tpu_custom_call.1} parent=1 // pred_region
      _
    $region37: #{tpu_custom_call.1} parent=1 // pred_fallthru
      _
    // Predicated region
    $region38: #{tpu_custom_call.1} parent=1 // pred_check
      _
    $region39: #{tpu_custom_call.1} parent=1 // pred_check_branch
      %1045 = sbr.rel (0) target = $region41
    $region40: #{tpu_custom_call.1} parent=1 // pred_region
      _
    $region41: #{tpu_custom_call.1} parent=1 // pred_fallthru
      _
    // Predicated region
    $region42: #{tpu_custom_call.1} parent=1 // pred_check
      _
    $region43: #{tpu_custom_call.1} parent=1 // pred_check_branch
      %1047 = sbr.rel (0) target = $region45
    $region44: #{tpu_custom_call.1} parent=1 // pred_region
      _
    $region45: #{tpu_custom_call.1} parent=1 // pred_fallthru
      _
    %1048 = vsyncpa [#allocation4], 1
    %1049 = vsyncpa [#allocation7], 1
    %1050 = vsyncpa [#allocation5], 1

</llo_original>
